<compile_context>
chip_gen: v5e
topology: v5e:2x2
jax: 0.10.0
libtpu: 0.0.40
codegen_flags: <defaults>
</compile_context>

<pallas_src>
import functools

import jax
import jax.numpy as jnp
import numpy as np
from jax import lax
from jax.experimental import pallas as pl
from jax.experimental.pallas import tpu as pltpu


_LANE = 128
_OUT_W = 128          # packed output slab: heads(10) | TCO(16) | K(9) | pad
_HEAD_DIM = 10        # pose_dim(9) + focal_length(1)


def _round_up(x, m):
    return -(-x // m) * m


def _vmem_capacity_bytes():
    try:
        info = pltpu.get_tpu_info()
        cap = int(getattr(info, "vmem_capacity_bytes", 0) or 0)
        if cap > 0:
            return cap
    except Exception:
        pass
    return 128 * 1024 * 1024


def _plan_tiles(B, C, HW, itemsize, budget):
    """Pick (tb, tc, thw) so the resident VMEM footprint fits `budget`."""
    sub = {4: 8, 2: 16, 1: 32}.get(itemsize, 8)

    def vmem_bytes(tb, tc, thw):
        tb8 = _round_up(tb, 8)
        feat = 2 * tb * _round_up(tc, sub) * _round_up(thw, _LANE) * itemsize
        pool = tb8 * _round_up(tc, _LANE) * 4           # f32 scratch
        hacc = tb8 * _LANE * 4                          # f32 scratch
        wblk = 2 * _round_up(tc, 8) * _LANE * 4         # (tc, 10) f32, 2-buffered
        bblk = 2 * 8 * _LANE * 4
        side = 2 * 4 * tb8 * _LANE * 4                  # tco/kc/kin in + slab out
        return feat + pool + hacc + wblk + bblk + side

    # 1) batch tile: <= 256 MXU rows, multiple of 8, and >= 2 blocks whenever
    #    B > 8 so the "parallel" axis can shard across v7x's two TensorCores.
    tb = B if B <= 8 else min(256, _round_up(-(-B // 2), 8))
    tc, thw = C, HW
    while tb > 8 and vmem_bytes(tb, tc, thw) > budget:
        tb = max(8, (tb // 2) // 8 * 8)
    # 2) tile the HW (lane) reduction axis.
    while thw > _LANE and vmem_bytes(tb, tc, thw) > budget:
        thw = max(_LANE, _round_up(thw // 2, _LANE))
    # 3) last resort: tile the channel axis (extra reduction grid axis).
    while tc > sub and vmem_bytes(tb, tc, thw) > budget:
        tc = max(sub, _round_up(tc // 2, sub))
    if vmem_bytes(tb, tc, thw) > budget:
        raise ValueError(
            f"minimum feature block ({tb},{tc},{thw}) does not fit the VMEM "
            f"budget of {budget} bytes")
    return tb, tc, thw


# ---------------------------------------------------------------------------
# Fused kernel: pooled-sum over (C, HW) reduction tiles, then (at the final
# reduction step) the head matmul + ortho6d pose update + camera update.
# ---------------------------------------------------------------------------
def _fused_kernel(feat_ref, w_ref, b_ref, tco_ref, kc_ref, kin_ref,
                  out_ref, pool_ref, hacc_ref, *,
                  inv_hw, hw_total, thw, c_total, tc, ragged_hw, ragged_c):
    # feat_ref: (TB, TC, THW) native dtype    w_ref: (TC, 10)   b_ref: (1, 10)
    # tco_ref:  (TB, 16) row-major 4x4        kc_ref/kin_ref: (TB, 9) row-major 3x3
    # out_ref:  (TB, 128) packed heads|TCO|K  pool_ref: (TB, TC) f32
    # hacc_ref: (TB, 10) f32
    c = pl.program_id(1)
    s = pl.program_id(2)
    nc = pl.num_programs(1)
    ns = pl.num_programs(2)

    @pl.when((c == 0) & (s == 0))
    def _zero_heads_acc():
        hacc_ref[...] = jnp.zeros_like(hacc_ref)

    @pl.when(s == 0)
    def _zero_pool():
        pool_ref[...] = jnp.zeros_like(pool_ref)

    # ---- pooled sum over the HW (lane) axis, accumulated in f32 ----
    x = feat_ref[...]                                       # native dtype load
    if ragged_hw:
        # mask out-of-bounds lanes of the (partial) last HW tile
        lane = lax.broadcasted_iota(jnp.int32, x.shape, dimension=2)
        x = jnp.where(lane < (hw_total - s * thw), x, jnp.zeros_like(x))
    pool_ref[...] += jnp.sum(x, axis=-1, dtype=jnp.float32)

    # ---- fold this channel block into the fused (pose|focal) head matmul ----
    @pl.when(s == ns - 1)
    def _accumulate_heads():
        pooled = pool_ref[...]                              # (TB, TC) f32
        wv = w_ref[...]                                     # (TC, 10) f32
        if ragged_c:
            # Zero BOTH sides of the dot for out-of-bounds channels: stale
            # VMEM could hold non-finite bits and 0*NaN would poison rows.
            rem = c_total - c * tc
            pooled = jnp.where(
                lax.broadcasted_iota(jnp.int32, pooled.shape, 1) < rem,
                pooled, jnp.zeros_like(pooled))
            wv = jnp.where(
                lax.broadcasted_iota(jnp.int32, wv.shape, 0) < rem,
                wv, jnp.zeros_like(wv))
        hacc_ref[...] += jnp.dot(pooled, wv,
                                 preferred_element_type=jnp.float32)

    # ---- final reduction step: heads -> pose/camera update, one store ----
    @pl.when((c == nc - 1) & (s == ns - 1))
    def _epilogue():
        heads = hacc_ref[...] * jnp.float32(inv_hw) + b_ref[...]   # (TB, 10)
        pose = heads[:, 0:9]
        focal = heads[:, 9:10]
        T = tco_ref[...]
        Kc = kc_ref[...]
        Kin = kin_ref[...]

        # --- compute_rotation_matrix_from_ortho6d (componentwise) ---
        eps2 = jnp.float32(1e-16)                   # == (1e-8)^2
        xr0, xr1, xr2 = pose[:, 0:1], pose[:, 1:2], pose[:, 2:3]
        yr0, yr1, yr2 = pose[:, 3:4], pose[:, 4:5], pose[:, 5:6]
        inv_xn = lax.rsqrt(jnp.maximum(xr0 * xr0 + xr1 * xr1 + xr2 * xr2, eps2))
        x0, x1, x2 = xr0 * inv_xn, xr1 * inv_xn, xr2 * inv_xn
        # z = normalize(cross(x, y_raw))
        z0 = x1 * yr2 - x2 * yr1
        z1 = x2 * yr0 - x0 * yr2
        z2 = x0 * yr1 - x1 * yr0
        inv_zn = lax.rsqrt(jnp.maximum(z0 * z0 + z1 * z1 + z2 * z2, eps2))
        z0, z1, z2 = z0 * inv_zn, z1 * inv_zn, z2 * inv_zn
        # y = cross(z, x)
        y0 = z1 * x2 - z2 * x1
        y1 = z2 * x0 - z0 * x2
        y2 = z0 * x1 - z1 * x0
        # dR columns are (x, y, z); rows of (dR @ R) = x_i*R0 + y_i*R1 + z_i*R2
        R0, R1, R2 = T[:, 0:3], T[:, 4:7], T[:, 8:11]
        Rn0 = x0 * R0 + y0 * R1 + z0 * R2
        Rn1 = x1 * R0 + y1 * R1 + z1 * R2
        Rn2 = x2 * R0 + y2 * R1 + z2 * R2

        # --- apply_imagespace_predictions (translation update) ---
        vx, vy, vz = pose[:, 6:7], pose[:, 7:8], pose[:, 8:9]
        zsrc = T[:, 11:12]                          # TCO[:, 2, 3]
        ztgt = vz * zsrc
        inv_z = pl.reciprocal(zsrc)                 # exact
        inv_fx = pl.reciprocal(Kc[:, 0:1])          # K_crop[:, 0, 0]
        inv_fy = pl.reciprocal(Kc[:, 4:5])          # K_crop[:, 1, 1]
        tx = (vx * inv_fx + T[:, 3:4] * inv_z) * ztgt
        ty = (vy * inv_fy + T[:, 7:8] * inv_z) * ztgt

        # --- update_camera_matrix ---
        sc = jnp.exp(focal)

        # Single lane-dense store: heads[0:10) | TCO[10:26) | K[26:35) | pad
        pad = jnp.zeros((heads.shape[0], out_ref.shape[1] - (10 + 16 + 9)),
                        jnp.float32)
        out_ref[...] = jnp.concatenate(
            [heads,
             Rn0, tx, Rn1, ty, Rn2, ztgt, T[:, 12:16],
             sc * Kin[:, 0:1], Kin[:, 1:4], sc * Kin[:, 4:5], Kin[:, 5:9],
             pad], axis=1)


def fused_net_and_update(feat_nchw, w_cat, b_cat, TCO, K_crop, K_input,
                         *, tile_override=None):
    """Pool + fused heads + pose/camera update in ONE pallas_call.

    feat_nchw: (B, C, H, W) backbone output in its native dtype / NCHW layout.
    Returns heads (B, 10), TCO_out (B, 4, 4), K_updated (B, 3, 3).
    """
    B, C, H, W = feat_nchw.shape
    HW = H * W
    D = w_cat.shape[1]
    assert D == _HEAD_DIM, "pose_dim=9 + focal_length=1 heads expected"
    x = feat_nchw.reshape(B, C, HW)          # free reshape, no copy
    itemsize = jnp.dtype(x.dtype).itemsize

    # Per-generation VMEM budget: ~96 MiB on v5e/v6e (128 MiB VMEM), ~48 MiB
    # on v7x (64 MiB VMEM); 4 MiB headroom for Mosaic-internal scratch.
    vmem_limit = min((_vmem_capacity_bytes() * 3) // 4, 100 * 1024 * 1024)
    if tile_override is None:
        tb, tc, thw = _plan_tiles(B, C, HW, itemsize, vmem_limit - (4 << 20))
    else:
        tb, tc, thw = tile_override

    nb, nc, ns = pl.cdiv(B, tb), pl.cdiv(C, tc), pl.cdiv(HW, thw)
    ragged_hw = (HW % thw) != 0
    ragged_c = (C % tc) != 0

    tco16 = TCO.reshape(B, 16).astype(jnp.float32)
    kc9 = K_crop.reshape(B, 9).astype(jnp.float32)
    kin9 = K_input.reshape(B, 9).astype(jnp.float32)

    kernel = functools.partial(
        _fused_kernel, inv_hw=1.0 / HW, hw_total=HW, thw=thw,
        c_total=C, tc=tc, ragged_hw=ragged_hw, ragged_c=ragged_c)

    cost = pl.CostEstimate(
        flops=int(B * C * HW + 2 * B * C * D + 128 * B),
        transcendentals=int(6 * B),
        bytes_accessed=int(B * C * HW * itemsize
                           + (C * D + D + B * (16 + 9 + 9 + _OUT_W)) * 4),
    )

    slab = pl.pallas_call(
        kernel,
        grid=(nb, nc, ns),
        in_specs=[
            pl.BlockSpec((tb, tc, thw), lambda b, c, s: (b, c, s)),
            pl.BlockSpec((tc, D), lambda b, c, s: (c, 0)),
            pl.BlockSpec((1, D), lambda b, c, s: (0, 0)),
            pl.BlockSpec((tb, 16), lambda b, c, s: (b, 0)),
            pl.BlockSpec((tb, 9), lambda b, c, s: (b, 0)),
            pl.BlockSpec((tb, 9), lambda b, c, s: (b, 0)),
        ],
        out_specs=pl.BlockSpec((tb, _OUT_W), lambda b, c, s: (b, 0)),
        out_shape=jax.ShapeDtypeStruct((B, _OUT_W), jnp.float32),
        scratch_shapes=[pltpu.VMEM((tb, tc), jnp.float32),
                        pltpu.VMEM((tb, D), jnp.float32)],
        compiler_params=pltpu.CompilerParams(
            dimension_semantics=("parallel", "arbitrary", "arbitrary"),
            vmem_limit_bytes=int(vmem_limit)),
        cost_estimate=cost,
    )(x, w_cat, b_cat, tco16, kc9, kin9)

    heads = slab[:, 0:D]
    tco_new = slab[:, D:D + 16].reshape(B, 4, 4)
    k_new = slab[:, D + 16:D + 25].reshape(B, 3, 3)
    return heads, tco_new, k_new


# ---------------------------------------------------------------------------
# Parameter preparation (done ONCE, outside the iterative forward)
# ---------------------------------------------------------------------------
def prepare_head_params(params):
    w_cat = jnp.concatenate([params["w_pose"], params["w_focal"]],
                            axis=0).T.astype(jnp.float32)               # (C, 10)
    b_cat = jnp.concatenate([params["b_pose"],
                             params["b_focal"]]).astype(jnp.float32)[None, :]
    return w_cat, b_cat


# ---------------------------------------------------------------------------
# PosePredictor forward (single iteration, pose_dim=9)
# ---------------------------------------------------------------------------
def pose_predictor_forward(feat_map, K, K_crop, TCO, head_params,
                           update_focal_length=False):
    # TODO(synk): backbone(x), renderer.render and crop_inputs (mesh_db,
    # project_points, deepim_crops, get_K_crop_resize) are external modules
    # with no Pallas equivalent; `feat_map` stands in for
    # backbone(cat(images_crop, renders)) and `K_crop` for the crop_inputs K.
    w_cat, b_cat = head_params
    heads, TCO_output, K_updated = fused_net_and_update(
        feat_map, w_cat, b_cat, TCO, K_crop, K)
    pose_out = heads[:, :9]
    focal_out = heads[:, 9:10]
    K_output = K_updated if update_focal_length else K
    # TODO(synk): when update_focal_length=True the module re-runs crop_inputs
    # to get K_crop_output; we reuse K_crop_input here.
    return {
        "iteration=1": {
            "TCO_input": TCO,
            "TCO_output": TCO_output,
            "K_crop_input": K_crop,
            "K_crop_output": K_crop,
            "K_input": K,
            "K_output": K_output,
            "K_updated": K_updated,
            "model_outputs": {"pose": pose_out, "focal_length": focal_out},
        }
    }


# ---------------------------------------------------------------------------
# Pure-JAX reference (mirrors the PyTorch semantics) for verification
# ---------------------------------------------------------------------------
def _ref_forward(feat, params, K, K_crop, TCO):
    B, C = feat.shape[0], feat.shape[1]
    x = feat.astype(jnp.float32).reshape(B, C, -1).mean(-1)
    pose = x @ params["w_pose"].T + params["b_pose"]
    focal = x @ params["w_focal"].T + params["b_focal"]

    def normv(v):
        return v / jnp.maximum(jnp.linalg.norm(v, axis=1, keepdims=True), 1e-8)

    xv = normv(pose[:, 0:3])
    zv = normv(jnp.cross(xv, pose[:, 3:6]))
    yv = jnp.cross(zv, xv)
    dR = jnp.stack([xv, yv, zv], axis=2)
    vxvyvz = pose[:, 6:9]
    zsrc = TCO[:, 2, 3:4]
    ztgt = vxvyvz[:, 2:3] * zsrc
    fxfy = jnp.stack([K_crop[:, 0, 0], K_crop[:, 1, 1]], axis=1)
    txy = (vxvyvz[:, :2] / fxfy + TCO[:, :2, 3] / zsrc) * ztgt
    TCO_out = TCO
    TCO_out = TCO_out.at[:, :3, :3].set(jnp.einsum("bij,bjk->bik", dR, TCO[:, :3, :3]))
    TCO_out = TCO_out.at[:, :2, 3].set(txy)
    TCO_out = TCO_out.at[:, 2, 3].set(ztgt[:, 0])
    s = jnp.exp(focal[:, 0])
    K_upd = K.at[:, 0, 0].set(s * K[:, 0, 0]).at[:, 1, 1].set(s * K[:, 1, 1])
    return pose, focal, TCO_out, K_upd


# ---------------------------------------------------------------------------
# Deterministic example inputs + verification
# ---------------------------------------------------------------------------
def _example_params(key, n_features, pose_dim=9):
    k_wp, k_bp, k_wf, k_bf = jax.random.split(key, 4)
    bound = 1.0 / np.sqrt(n_features)
    return {
        "w_pose": jax.random.uniform(k_wp, (pose_dim, n_features), jnp.float32, -bound, bound),
        "b_pose": jax.random.uniform(k_bp, (pose_dim,), jnp.float32, -bound, bound),
        "w_focal": jax.random.uniform(k_wf, (1, n_features), jnp.float32, -bound, bound),
        "b_focal": jax.random.uniform(k_bf, (1,), jnp.float32, -bound, bound),
    }


def _example_cameras(B):
    K = jnp.broadcast_to(
        jnp.array([[600.0, 0.0, 160.0], [0.0, 620.0, 120.0], [0.0, 0.0, 1.0]],
                  jnp.float32), (B, 3, 3))
    K_crop = jnp.broadcast_to(
        jnp.array([[450.0, 0.0, 170.0], [0.0, 470.0, 115.0], [0.0, 0.0, 1.0]],
                  jnp.float32), (B, 3, 3))
    t = jnp.arange(B, dtype=jnp.float32)
    TCO = jnp.broadcast_to(jnp.eye(4, dtype=jnp.float32), (B, 4, 4))
    TCO = TCO.at[:, 0, 3].set(0.10 - 0.01 * t)
    TCO = TCO.at[:, 1, 3].set(-0.02 + 0.015 * t)
    TCO = TCO.at[:, 2, 3].set(1.20 + 0.05 * t)
    return K, K_crop, TCO


def _check(feat, params, head_params, K, K_crop, TCO, *, tile_override=None,
           rtol=1e-4, atol=1e-5):
    heads, tco_new, k_new = fused_net_and_update(
        feat, head_params[0], head_params[1], TCO, K_crop, K,
        tile_override=tile_override)
    heads, tco_new, k_new = jax.block_until_ready((heads, tco_new, k_new))
    pose_r, focal_r, tco_r, k_r = _ref_forward(feat, params, K, K_crop, TCO)
    np.testing.assert_allclose(np.asarray(heads[:, :9]), np.asarray(pose_r),
                               rtol=rtol, atol=atol)
    np.testing.assert_allclose(np.asarray(heads[:, 9:10]), np.asarray(focal_r),
                               rtol=rtol, atol=atol)
    np.testing.assert_allclose(np.asarray(tco_new), np.asarray(tco_r),
                               rtol=rtol, atol=atol)
    np.testing.assert_allclose(np.asarray(k_new), np.asarray(k_r),
                               rtol=rtol, atol=atol)


if __name__ == "__main__":
    root = jax.random.PRNGKey(0)
    k1, k2, k3, kp1, kp2, kp3 = jax.random.split(root, 6)

    # --- 1) trivial path (single block: nb=nc=ns=1), f32, full forward API ---
    B, C, Hf, Wf = 2, 32, 8, 8
    params = _example_params(kp1, C)
    head_params = prepare_head_params(params)   # hoisted out of the forward
    feat = jax.random.normal(k1, (B, C, Hf, Wf), jnp.float32)
    K, K_crop, TCO = _example_cameras(B)
    out = pose_predictor_forward(feat, K, K_crop, TCO, head_params)
    out = jax.block_until_ready(out)
    _check(feat, params, head_params, K, K_crop, TCO)

    # --- 2) forced multi-block path: 2 batch blocks (megacore layout),
    #        ragged channel tiles (C=20, TC=8) and ragged HW tiles (144/128) ---
    B2, C2, H2, W2 = 16, 20, 12, 12
    params2 = _example_params(kp2, C2)
    head_params2 = prepare_head_params(params2)
    feat2 = jax.random.normal(k2, (B2, C2, H2, W2), jnp.float32)
    K2, Kc2, TCO2 = _example_cameras(B2)
    _check(feat2, params2, head_params2, K2, Kc2, TCO2, tile_override=(8, 8, 128))

    # --- 3) bf16 feature map on the trivial path (fused widening reduce) ---
    B3, C3 = 4, 32
    params3 = _example_params(kp3, C3)
    head_params3 = prepare_head_params(params3)
    feat3 = jax.random.normal(k3, (B3, C3, 8, 8), jnp.float32).astype(jnp.bfloat16)
    K3, Kc3, TCO3 = _example_cameras(B3)
    _check(feat3, params3, head_params3, K3, Kc3, TCO3, rtol=1e-3, atol=1e-4)

    print("KERNEL_OK")
</pallas_src>

<mosaic_0001>
module attributes {stable_mosaic.version = 11 : i64} {
  func.func @_fused_kernel(%arg0: i32, %arg1: i32, %arg2: i32, %arg3: memref<2x32x64xf32, #tpu.memory_space<vmem>>, %arg4: memref<32x10xf32, #tpu.memory_space<vmem>>, %arg5: memref<1x10xf32, #tpu.memory_space<vmem>>, %arg6: memref<2x16xf32, #tpu.memory_space<vmem>>, %arg7: memref<2x9xf32, #tpu.memory_space<vmem>>, %arg8: memref<2x9xf32, #tpu.memory_space<vmem>>, %arg9: memref<2x128xf32, #tpu.memory_space<vmem>>, %arg10: memref<2x32xf32, #tpu.memory_space<vmem>>, %arg11: memref<2x10xf32, #tpu.memory_space<vmem>>) attributes {dimension_semantics = [#tpu.dimension_semantics<parallel>, #tpu.dimension_semantics<arbitrary>, #tpu.dimension_semantics<arbitrary>], iteration_bounds = array<i64: 1, 1, 1>, scalar_prefetch = 0 : i64, scratch_operands = 2 : i64, tpu.core_type = #tpu.core_type<tc>, window_params = [{transform_indices = @transform_0, window_bounds = array<i64: 2, 32, 64>}, {transform_indices = @transform_1, window_bounds = array<i64: 32, 10>}, {pipeline_mode = #tpu.pipeline_mode<synchronous>, transform_indices = @transform_2, window_bounds = array<i64: 1, 10>}, {transform_indices = @transform_3, window_bounds = array<i64: 2, 16>}, {transform_indices = @transform_4, window_bounds = array<i64: 2, 9>}, {transform_indices = @transform_5, window_bounds = array<i64: 2, 9>}, {transform_indices = @transform_6, window_bounds = array<i64: 2, 128>}]} {
    %c0_i32 = arith.constant 0 : i32
    %0 = arith.cmpi eq, %arg1, %c0_i32 : i32
    %c0_i32_0 = arith.constant 0 : i32
    %1 = arith.cmpi eq, %arg2, %c0_i32_0 : i32
    %2 = arith.andi %0, %1 : i1
    %3 = arith.extui %2 : i1 to i32
    %c0_i32_1 = arith.constant 0 : i32
    %4 = arith.cmpi ne, %3, %c0_i32_1 : i32
    scf.if %4 {
      %cst_15 = arith.constant 0.000000e+00 : f32
      %21 = vector.broadcast %cst_15 : f32 to vector<2x10xf32>
      %c0_16 = arith.constant 0 : index
      %c0_17 = arith.constant 0 : index
      %22 = vector.load %arg11[%c0_16, %c0_17] : memref<2x10xf32, #tpu.memory_space<vmem>>, vector<2x10xf32>
      tpu.vector_store %arg11[%c0_16, %c0_17], %21 {strides = array<i32>} : memref<2x10xf32, #tpu.memory_space<vmem>>, vector<2x10xf32>,
    } else {
    }
    %c0_i32_2 = arith.constant 0 : i32
    %5 = arith.cmpi eq, %arg2, %c0_i32_2 : i32
    %6 = arith.extui %5 : i1 to i32
    %c0_i32_3 = arith.constant 0 : i32
    %7 = arith.cmpi ne, %6, %c0_i32_3 : i32
    scf.if %7 {
      %cst_15 = arith.constant 0.000000e+00 : f32
      %21 = vector.broadcast %cst_15 : f32 to vector<2x32xf32>
      %c0_16 = arith.constant 0 : index
      %c0_17 = arith.constant 0 : index
      %22 = vector.load %arg10[%c0_16, %c0_17] : memref<2x32xf32, #tpu.memory_space<vmem>>, vector<2x32xf32>
      tpu.vector_store %arg10[%c0_16, %c0_17], %21 {strides = array<i32>} : memref<2x32xf32, #tpu.memory_space<vmem>>, vector<2x32xf32>,
    } else {
    }
    %c0 = arith.constant 0 : index
    %c0_4 = arith.constant 0 : index
    %c0_5 = arith.constant 0 : index
    %8 = vector.load %arg3[%c0, %c0_4, %c0_5] : memref<2x32x64xf32, #tpu.memory_space<vmem>>, vector<2x32x64xf32>
    %c0_6 = arith.constant 0 : index
    %c0_7 = arith.constant 0 : index
    %9 = vector.load %arg10[%c0_6, %c0_7] : memref<2x32xf32, #tpu.memory_space<vmem>>, vector<2x32xf32>
    %cst = arith.constant dense<0.000000e+00> : vector<2x32xf32>
    %10 = vector.multi_reduction <add>, %8, %cst [2] : vector<2x32x64xf32> to vector<2x32xf32>
    %11 = arith.addf %9, %10 : vector<2x32xf32>
    %c0_8 = arith.constant 0 : index
    %c0_9 = arith.constant 0 : index
    %12 = vector.load %arg10[%c0_8, %c0_9] : memref<2x32xf32, #tpu.memory_space<vmem>>, vector<2x32xf32>
    tpu.vector_store %arg10[%c0_8, %c0_9], %11 {strides = array<i32>} : memref<2x32xf32, #tpu.memory_space<vmem>>, vector<2x32xf32>,
    %c0_i32_10 = arith.constant 0 : i32
    %13 = arith.cmpi eq, %arg2, %c0_i32_10 : i32
    %14 = arith.extui %13 : i1 to i32
    %c0_i32_11 = arith.constant 0 : i32
    %15 = arith.cmpi ne, %14, %c0_i32_11 : i32
    scf.if %15 {
      %c0_15 = arith.constant 0 : index
      %c0_16 = arith.constant 0 : index
      %21 = vector.load %arg10[%c0_15, %c0_16] : memref<2x32xf32, #tpu.memory_space<vmem>>, vector<2x32xf32>
      %c0_17 = arith.constant 0 : index
      %c0_18 = arith.constant 0 : index
      %22 = vector.load %arg4[%c0_17, %c0_18] : memref<32x10xf32, #tpu.memory_space<vmem>>, vector<32x10xf32>
      %c0_19 = arith.constant 0 : index
      %c0_20 = arith.constant 0 : index
      %23 = vector.load %arg11[%c0_19, %c0_20] : memref<2x10xf32, #tpu.memory_space<vmem>>, vector<2x10xf32>
      %cst_21 = arith.constant dense<0.000000e+00> : vector<2x10xf32>
      %24 = tpu.matmul %21, %22, %cst_21 {dimension_numbers = #tpu.dot_dimension_numbers<[1], [0], [0], [1], [0, 0, 1, 1], [], []>} : vector<2x32xf32>, vector<32x10xf32>, vector<2x10xf32> -> vector<2x10xf32>
      %25 = arith.addf %23, %24 : vector<2x10xf32>
      %c0_22 = arith.constant 0 : index
      %c0_23 = arith.constant 0 : index
      %26 = vector.load %arg11[%c0_22, %c0_23] : memref<2x10xf32, #tpu.memory_space<vmem>>, vector<2x10xf32>
      tpu.vector_store %arg11[%c0_22, %c0_23], %25 {strides = array<i32>} : memref<2x10xf32, #tpu.memory_space<vmem>>, vector<2x10xf32>,
    } else {
    }
    %c0_i32_12 = arith.constant 0 : i32
    %16 = arith.cmpi eq, %arg1, %c0_i32_12 : i32
    %c0_i32_13 = arith.constant 0 : i32
    %17 = arith.cmpi eq, %arg2, %c0_i32_13 : i32
    %18 = arith.andi %16, %17 : i1
    %19 = arith.extui %18 : i1 to i32
    %c0_i32_14 = arith.constant 0 : i32
    %20 = arith.cmpi ne, %19, %c0_i32_14 : i32
    scf.if %20 {
      %c0_15 = arith.constant 0 : index
      %c0_16 = arith.constant 0 : index
      %21 = vector.load %arg11[%c0_15, %c0_16] : memref<2x10xf32, #tpu.memory_space<vmem>>, vector<2x10xf32>
      %cst_17 = arith.constant 1.562500e-02 : f32
      %22 = vector.broadcast %cst_17 : f32 to vector<2x10xf32>
      %23 = arith.mulf %21, %22 : vector<2x10xf32>
      %c0_18 = arith.constant 0 : index
      %c0_19 = arith.constant 0 : index
      %24 = vector.load %arg5[%c0_18, %c0_19] : memref<1x10xf32, #tpu.memory_space<vmem>>, vector<1x10xf32>
      %25 = vector.broadcast %24 : vector<1x10xf32> to vector<2x10xf32>
      %26 = arith.addf %23, %25 : vector<2x10xf32>
      %27 = vector.extract_strided_slice %26 {offsets = [0, 0], sizes = [2, 9], strides = [1, 1]} : vector<2x10xf32> to vector<2x9xf32>
      %28 = vector.extract_strided_slice %26 {offsets = [0, 9], sizes = [2, 1], strides = [1, 1]} : vector<2x10xf32> to vector<2x1xf32>
      %c0_20 = arith.constant 0 : index
      %c0_21 = arith.constant 0 : index
      %29 = vector.load %arg6[%c0_20, %c0_21] : memref<2x16xf32, #tpu.memory_space<vmem>>, vector<2x16xf32>
      %c0_22 = arith.constant 0 : index
      %c0_23 = arith.constant 0 : index
      %30 = vector.load %arg7[%c0_22, %c0_23] : memref<2x9xf32, #tpu.memory_space<vmem>>, vector<2x9xf32>
      %c0_24 = arith.constant 0 : index
      %c0_25 = arith.constant 0 : index
      %31 = vector.load %arg8[%c0_24, %c0_25] : memref<2x9xf32, #tpu.memory_space<vmem>>, vector<2x9xf32>
      %32 = vector.extract_strided_slice %27 {offsets = [0, 0], sizes = [2, 1], strides = [1, 1]} : vector<2x9xf32> to vector<2x1xf32>
      %33 = vector.extract_strided_slice %27 {offsets = [0, 1], sizes = [2, 1], strides = [1, 1]} : vector<2x9xf32> to vector<2x1xf32>
      %34 = vector.extract_strided_slice %27 {offsets = [0, 2], sizes = [2, 1], strides = [1, 1]} : vector<2x9xf32> to vector<2x1xf32>
      %35 = vector.extract_strided_slice %27 {offsets = [0, 3], sizes = [2, 1], strides = [1, 1]} : vector<2x9xf32> to vector<2x1xf32>
      %36 = vector.extract_strided_slice %27 {offsets = [0, 4], sizes = [2, 1], strides = [1, 1]} : vector<2x9xf32> to vector<2x1xf32>
      %37 = vector.extract_strided_slice %27 {offsets = [0, 5], sizes = [2, 1], strides = [1, 1]} : vector<2x9xf32> to vector<2x1xf32>
      %38 = arith.mulf %32, %32 : vector<2x1xf32>
      %39 = arith.mulf %33, %33 : vector<2x1xf32>
      %40 = arith.addf %38, %39 : vector<2x1xf32>
      %41 = arith.mulf %34, %34 : vector<2x1xf32>
      %42 = arith.addf %40, %41 : vector<2x1xf32>
      %cst_26 = arith.constant 1.000000e-16 : f32
      %43 = vector.broadcast %cst_26 : f32 to vector<2x1xf32>
      %44 = arith.maximumf %42, %43 : vector<2x1xf32>
      %45 = math.rsqrt %44 : vector<2x1xf32>
      %46 = arith.mulf %32, %45 : vector<2x1xf32>
      %47 = arith.mulf %33, %45 : vector<2x1xf32>
      %48 = arith.mulf %34, %45 : vector<2x1xf32>
      %49 = arith.mulf %47, %37 : vector<2x1xf32>
      %50 = arith.mulf %48, %36 : vector<2x1xf32>
      %51 = arith.subf %49, %50 : vector<2x1xf32>
      %52 = arith.mulf %48, %35 : vector<2x1xf32>
      %53 = arith.mulf %46, %37 : vector<2x1xf32>
      %54 = arith.subf %52, %53 : vector<2x1xf32>
      %55 = arith.mulf %46, %36 : vector<2x1xf32>
      %56 = arith.mulf %47, %35 : vector<2x1xf32>
      %57 = arith.subf %55, %56 : vector<2x1xf32>
      %58 = arith.mulf %51, %51 : vector<2x1xf32>
      %59 = arith.mulf %54, %54 : vector<2x1xf32>
      %60 = arith.addf %58, %59 : vector<2x1xf32>
      %61 = arith.mulf %57, %57 : vector<2x1xf32>
      %62 = arith.addf %60, %61 : vector<2x1xf32>
      %cst_27 = arith.constant 1.000000e-16 : f32
      %63 = vector.broadcast %cst_27 : f32 to vector<2x1xf32>
      %64 = arith.maximumf %62, %63 : vector<2x1xf32>
      %65 = math.rsqrt %64 : vector<2x1xf32>
      %66 = arith.mulf %51, %65 : vector<2x1xf32>
      %67 = arith.mulf %54, %65 : vector<2x1xf32>
      %68 = arith.mulf %57, %65 : vector<2x1xf32>
      %69 = arith.mulf %67, %48 : vector<2x1xf32>
      %70 = arith.mulf %68, %47 : vector<2x1xf32>
      %71 = arith.subf %69, %70 : vector<2x1xf32>
      %72 = arith.mulf %68, %46 : vector<2x1xf32>
      %73 = arith.mulf %66, %48 : vector<2x1xf32>
      %74 = arith.subf %72, %73 : vector<2x1xf32>
      %75 = arith.mulf %66, %47 : vector<2x1xf32>
      %76 = arith.mulf %67, %46 : vector<2x1xf32>
      %77 = arith.subf %75, %76 : vector<2x1xf32>
      %78 = vector.extract_strided_slice %29 {offsets = [0, 0], sizes = [2, 3], strides = [1, 1]} : vector<2x16xf32> to vector<2x3xf32>
      %79 = vector.extract_strided_slice %29 {offsets = [0, 4], sizes = [2, 3], strides = [1, 1]} : vector<2x16xf32> to vector<2x3xf32>
      %80 = vector.extract_strided_slice %29 {offsets = [0, 8], sizes = [2, 3], strides = [1, 1]} : vector<2x16xf32> to vector<2x3xf32>
      %81 = vector.broadcast %46 : vector<2x1xf32> to vector<2x3xf32>
      %82 = arith.mulf %81, %78 : vector<2x3xf32>
      %83 = vector.broadcast %71 : vector<2x1xf32> to vector<2x3xf32>
      %84 = arith.mulf %83, %79 : vector<2x3xf32>
      %85 = arith.addf %82, %84 : vector<2x3xf32>
      %86 = vector.broadcast %66 : vector<2x1xf32> to vector<2x3xf32>
      %87 = arith.mulf %86, %80 : vector<2x3xf32>
      %88 = arith.addf %85, %87 : vector<2x3xf32>
      %89 = vector.broadcast %47 : vector<2x1xf32> to vector<2x3xf32>
      %90 = arith.mulf %89, %78 : vector<2x3xf32>
      %91 = vector.broadcast %74 : vector<2x1xf32> to vector<2x3xf32>
      %92 = arith.mulf %91, %79 : vector<2x3xf32>
      %93 = arith.addf %90, %92 : vector<2x3xf32>
      %94 = vector.broadcast %67 : vector<2x1xf32> to vector<2x3xf32>
      %95 = arith.mulf %94, %80 : vector<2x3xf32>
      %96 = arith.addf %93, %95 : vector<2x3xf32>
      %97 = vector.broadcast %48 : vector<2x1xf32> to vector<2x3xf32>
      %98 = arith.mulf %97, %78 : vector<2x3xf32>
      %99 = vector.broadcast %77 : vector<2x1xf32> to vector<2x3xf32>
      %100 = arith.mulf %99, %79 : vector<2x3xf32>
      %101 = arith.addf %98, %100 : vector<2x3xf32>
      %102 = vector.broadcast %68 : vector<2x1xf32> to vector<2x3xf32>
      %103 = arith.mulf %102, %80 : vector<2x3xf32>
      %104 = arith.addf %101, %103 : vector<2x3xf32>
      %105 = vector.extract_strided_slice %27 {offsets = [0, 6], sizes = [2, 1], strides = [1, 1]} : vector<2x9xf32> to vector<2x1xf32>
      %106 = vector.extract_strided_slice %27 {offsets = [0, 7], sizes = [2, 1], strides = [1, 1]} : vector<2x9xf32> to vector<2x1xf32>
      %107 = vector.extract_strided_slice %27 {offsets = [0, 8], sizes = [2, 1], strides = [1, 1]} : vector<2x9xf32> to vector<2x1xf32>
      %108 = vector.extract_strided_slice %29 {offsets = [0, 11], sizes = [2, 1], strides = [1, 1]} : vector<2x16xf32> to vector<2x1xf32>
      %109 = arith.mulf %107, %108 : vector<2x1xf32>
      %110 = tpu.reciprocal %108 : vector<2x1xf32> -> vector<2x1xf32>
      %111 = vector.extract_strided_slice %30 {offsets = [0, 0], sizes = [2, 1], strides = [1, 1]} : vector<2x9xf32> to vector<2x1xf32>
      %112 = tpu.reciprocal %111 : vector<2x1xf32> -> vector<2x1xf32>
      %113 = vector.extract_strided_slice %30 {offsets = [0, 4], sizes = [2, 1], strides = [1, 1]} : vector<2x9xf32> to vector<2x1xf32>
      %114 = tpu.reciprocal %113 : vector<2x1xf32> -> vector<2x1xf32>
      %115 = arith.mulf %105, %112 : vector<2x1xf32>
      %116 = vector.extract_strided_slice %29 {offsets = [0, 3], sizes = [2, 1], strides = [1, 1]} : vector<2x16xf32> to vector<2x1xf32>
      %117 = arith.mulf %116, %110 : vector<2x1xf32>
      %118 = arith.addf %115, %117 : vector<2x1xf32>
      %119 = arith.mulf %118, %109 : vector<2x1xf32>
      %120 = arith.mulf %106, %114 : vector<2x1xf32>
      %121 = vector.extract_strided_slice %29 {offsets = [0, 7], sizes = [2, 1], strides = [1, 1]} : vector<2x16xf32> to vector<2x1xf32>
      %122 = arith.mulf %121, %110 : vector<2x1xf32>
      %123 = arith.addf %120, %122 : vector<2x1xf32>
      %124 = arith.mulf %123, %109 : vector<2x1xf32>
      %125 = math.exp %28 : vector<2x1xf32>
      %cst_28 = arith.constant 0.000000e+00 : f32
      %126 = vector.broadcast %cst_28 : f32 to vector<2x93xf32>
      %127 = vector.extract_strided_slice %29 {offsets = [0, 12], sizes = [2, 4], strides = [1, 1]} : vector<2x16xf32> to vector<2x4xf32>
      %128 = vector.extract_strided_slice %31 {offsets = [0, 0], sizes = [2, 1], strides = [1, 1]} : vector<2x9xf32> to vector<2x1xf32>
      %129 = arith.mulf %125, %128 : vector<2x1xf32>
      %130 = vector.extract_strided_slice %31 {offsets = [0, 1], sizes = [2, 3], strides = [1, 1]} : vector<2x9xf32> to vector<2x3xf32>
      %131 = vector.extract_strided_slice %31 {offsets = [0, 4], sizes = [2, 1], strides = [1, 1]} : vector<2x9xf32> to vector<2x1xf32>
      %132 = arith.mulf %125, %131 : vector<2x1xf32>
      %133 = vector.extract_strided_slice %31 {offsets = [0, 5], sizes = [2, 4], strides = [1, 1]} : vector<2x9xf32> to vector<2x4xf32>
      %134 = tpu.concatenate %26, %88, %119, %96, %124, %104, %109, %127, %129, %130, %132, %133, %126 in 1 : vector<2x10xf32>, vector<2x3xf32>, vector<2x1xf32>, vector<2x3xf32>, vector<2x1xf32>, vector<2x3xf32>, vector<2x1xf32>, vector<2x4xf32>, vector<2x1xf32>, vector<2x3xf32>, vector<2x1xf32>, vector<2x4xf32>, vector<2x93xf32> -> vector<2x128xf32>
      %c0_29 = arith.constant 0 : index
      %c0_30 = arith.constant 0 : index
      %135 = vector.load %arg9[%c0_29, %c0_30] : memref<2x128xf32, #tpu.memory_space<vmem>>, vector<2x128xf32>
      tpu.vector_store %arg9[%c0_29, %c0_30], %134 {strides = array<i32>} : memref<2x128xf32, #tpu.memory_space<vmem>>, vector<2x128xf32>,
    } else {
    }
    return
  }
  func.func @transform_0(%arg0: i32, %arg1: i32, %arg2: i32) -> (i32, i32, i32) {
    %c0_i32 = arith.constant 0 : i32
    return %arg0, %arg1, %arg2 : i32, i32, i32
  }
  func.func @transform_1(%arg0: i32, %arg1: i32, %arg2: i32) -> (i32, i32) {
    %c0_i32 = arith.constant 0 : i32
    %c0_i32_0 = arith.constant 0 : i32
    return %arg1, %c0_i32 : i32, i32
  }
  func.func @transform_2(%arg0: i32, %arg1: i32, %arg2: i32) -> (i32, i32) {
    %c0_i32 = arith.constant 0 : i32
    %c0_i32_0 = arith.constant 0 : i32
    %c0_i32_1 = arith.constant 0 : i32
    return %c0_i32, %c0_i32_0 : i32, i32
  }
  func.func @transform_3(%arg0: i32, %arg1: i32, %arg2: i32) -> (i32, i32) {
    %c0_i32 = arith.constant 0 : i32
    %c0_i32_0 = arith.constant 0 : i32
    return %arg0, %c0_i32 : i32, i32
  }
  func.func @transform_4(%arg0: i32, %arg1: i32, %arg2: i32) -> (i32, i32) {
    %c0_i32 = arith.constant 0 : i32
    %c0_i32_0 = arith.constant 0 : i32
    return %arg0, %c0_i32 : i32, i32
  }
  func.func @transform_5(%arg0: i32, %arg1: i32, %arg2: i32) -> (i32, i32) {
    %c0_i32 = arith.constant 0 : i32
    %c0_i32_0 = arith.constant 0 : i32
    return %arg0, %c0_i32 : i32, i32
  }
  func.func @transform_6(%arg0: i32, %arg1: i32, %arg2: i32) -> (i32, i32) {
    %c0_i32 = arith.constant 0 : i32
    %c0_i32_0 = arith.constant 0 : i32
    return %arg0, %c0_i32 : i32, i32
  }
}

</mosaic_0001>

<llo_original>
// kernel: tpu_custom_call.1
$region0: #{tpu_custom_call.1}
  #allocation0 [shape = 'u32[]', space=smem, size = 0x4, offset = 0x4, fixed_abs, tag = 'smem constant byte address 0x4 - core index']
  #allocation1 [shape = 'u32[72,128]{1,0:T(1,128)}', space=vmem, size = 0x9000, scoped, tag = 'internal scratch']
  #allocation2 [shape = 'f32[2,32]{1,0:T(2,128)}', space=vmem, size = 0x400, scoped, tag = 'scratch operand']
  #allocation3 [shape = 'f32[2,10]{1,0:T(2,128)}', space=vmem, size = 0x400, scoped, tag = 'scratch operand']
  %s0 = inlined_call_operand.hbm [shape: f32[2,32,64], index: 0, kind: input, shape index: {}]
  %s1 = inlined_call_operand.vmem [shape: f32[32,10], index: 1, kind: input, shape index: {}]
  %s2 = inlined_call_operand.vmem [shape: f32[1,10], index: 2, kind: input, shape index: {}]
  %s3 = inlined_call_operand.vmem [shape: f32[2,16], index: 3, kind: input, shape index: {}]
  %s4 = inlined_call_operand.vmem [shape: f32[2,9], index: 4, kind: input, shape index: {}]
  %s5 = inlined_call_operand.vmem [shape: f32[2,9], index: 5, kind: input, shape index: {}]
  %s6 = inlined_call_operand.hbm [shape: f32[2,128], index: 6, kind: output, shape index: {}]
  %s7 = sld [smem:[#allocation0]]
  $region54: #{tpu_custom_call.1} parent=0
    _
  %s9 = ssub.s32 1, %s7
  %s10 = scalar_select 0, %s9, %s7
  $region1: #{tpu_custom_call.1} parent=0
    #allocation4 [shape = 'u8[32768]{0}', space=vmem, size = 0x8000, scoped, tag = 'input window, operand 0, single buffered']
    #allocation5 [shape = 's32[1]{0}', space=sflag, size = 0x4, scoped, tag = 'scoped memory for tpu_custom_call.1']
    #allocation6 [shape = 's32[1]{0}', space=sflag, size = 0x4, scoped, tag = 'scoped memory for tpu_custom_call.1']
    #allocation7 [shape = 'u8[1024]{0}', space=vmem, size = 0x400, scoped, tag = 'output window, operand 0, single buffered']
    %11 = vsyncpa [#allocation5], 0
    %12 = vsyncpa [#allocation6], 0
    // Predicated region
    $region2: #{tpu_custom_call.1} parent=1 // pred_check
      _
    $region3: #{tpu_custom_call.1} parent=1 // pred_check_branch
      %14 = sbr.rel (0) target = $region5
    $region4: #{tpu_custom_call.1} parent=1 // pred_region
      %16 = vsyncadd [#allocation5], 0
      %s17 = sshll.u32 %s0, 4
      %s18 = int_to_ptr.hbm [resolvable:$true] %s17
      %s19 = sshll.u32 [#allocation4], 4
      %s20 = int_to_ptr.vmem [resolvable:$true] %s19
      %25 = dma.hbm_to_vmem [thread:$0]  %s18, 1024, %s20, [#allocation5], 128, 128, 8
    $region5: #{tpu_custom_call.1} parent=1 // pred_fallthru
      _
    // Predicated region
    $region6: #{tpu_custom_call.1} parent=1 // pred_check
      _
    $region7: #{tpu_custom_call.1} parent=1 // pred_check_branch
      %27 = sbr.rel (0) target = $region9
    $region8: #{tpu_custom_call.1} parent=1 // pred_region
      _
    $region9: #{tpu_custom_call.1} parent=1 // pred_fallthru
      _
    // Predicated region
    $region10: #{tpu_custom_call.1} parent=1 // pred_check
      _
    $region11: #{tpu_custom_call.1} parent=1 // pred_check_branch
      %29 = sbr.rel (0) target = $region13
    $region12: #{tpu_custom_call.1} parent=1 // pred_region
      _
    $region13: #{tpu_custom_call.1} parent=1 // pred_fallthru
      _
    // Predicated region
    $region14: #{tpu_custom_call.1} parent=1 // pred_check
      _
    $region15: #{tpu_custom_call.1} parent=1 // pred_check_branch
      %31 = sbr.rel (0) target = $region17
    $region16: #{tpu_custom_call.1} parent=1 // pred_region
      _
    $region17: #{tpu_custom_call.1} parent=1 // pred_fallthru
      _
    // Predicated region
    $region18: #{tpu_custom_call.1} parent=1 // pred_check
      _
    $region19: #{tpu_custom_call.1} parent=1 // pred_check_branch
      %33 = sbr.rel (0) target = $region21
    $region20: #{tpu_custom_call.1} parent=1 // pred_region
      _
    $region21: #{tpu_custom_call.1} parent=1 // pred_fallthru
      _
    // Predicated region
    $region22: #{tpu_custom_call.1} parent=1 // pred_check
      _
    $region23: #{tpu_custom_call.1} parent=1 // pred_check_branch
      %35 = sbr.rel (0) target = $region25
    $region24: #{tpu_custom_call.1} parent=1 // pred_region
      _
    $region25: #{tpu_custom_call.1} parent=1 // pred_fallthru
      _
    // Predicated region
    $region26: #{tpu_custom_call.1} parent=1 // pred_check
      _
    $region27: #{tpu_custom_call.1} parent=1 // pred_check_branch
      %37 = sbr.rel (0) target = $region29
    $region28: #{tpu_custom_call.1} parent=1 // pred_region
      %39 = dma.done [#allocation5], 1024
    $region29: #{tpu_custom_call.1} parent=1 // pred_fallthru
      _
    %p40 = scmp.eq.s32.totalorder 0, 0
    %p41 = scmp.eq.s32.totalorder 0, 0
    %p42 = pnand %p40, %p41
    %p43 = pneg %p42
    // Predicated region
    $region30: #{tpu_custom_call.1} parent=1 // pred_check
      _
    $region31: #{tpu_custom_call.1} parent=1 // pred_check_branch
      %45 = sbr.rel (%p42) target = $region33
    $region32: #{tpu_custom_call.1} parent=1 // pred_region
      %vm46 = vcmask 74752
      %47 = vst.msk [vmem:[#allocation3] sm:$0x3] %vm46, 0.0
    $region33: #{tpu_custom_call.1} parent=1 // pred_fallthru
      _
    // Predicated region
    $region34: #{tpu_custom_call.1} parent=1 // pred_check
      %p48 = pneg %p41
    $region35: #{tpu_custom_call.1} parent=1 // pred_check_branch
      %50 = sbr.rel (%p48) target = $region37
    $region36: #{tpu_custom_call.1} parent=1 // pred_region
      %vm51 = vcmask 254976
      %52 = vst.msk [vmem:[#allocation2] sm:$0x3] %vm51, 0.0
    $region37: #{tpu_custom_call.1} parent=1 // pred_fallthru
      _
    %v53 = vld [vmem:[#allocation4] sm:$0xff]
    %v54 = vld [vmem:[#allocation4 + $0x8] sm:$0xff]
    %v55 = vld [vmem:[#allocation4 + $0x10] sm:$0xff]
    %v56 = vld [vmem:[#allocation4 + $0x18] sm:$0xff]
    %v57 = vld [vmem:[#allocation4 + $0x20] sm:$0xff]
    %v58 = vld [vmem:[#allocation4 + $0x28] sm:$0xff]
    %v59 = vld [vmem:[#allocation4 + $0x30] sm:$0xff]
    %v60 = vld [vmem:[#allocation4 + $0x38] sm:$0xff]
    %v61 = vld [vmem:[#allocation2] sm:$0x3]
    %vm62 = vcmask 523264
    %v63 = vsel %vm62, %v53, 0.0
    %64 = vadd.xlane.f32.xlu0 %v63
    %v65 = vpop.xlane.xlu0 %64
    %v66 = vsel %vm62, %v54, 0.0
    %67 = vadd.xlane.f32.xlu0 %v66
    %v68 = vpop.xlane.xlu0 %67
    %v69 = vsel %vm62, %v55, 0.0
    %70 = vadd.xlane.f32.xlu0 %v69
    %v71 = vpop.xlane.xlu0 %70
    %v72 = vsel %vm62, %v56, 0.0
    %73 = vadd.xlane.f32.xlu0 %v72
    %v74 = vpop.xlane.xlu0 %73
    %v75 = vsel %vm62, %v57, 0.0
    %76 = vadd.xlane.f32.xlu0 %v75
    %v77 = vpop.xlane.xlu0 %76
    %v78 = vsel %vm62, %v58, 0.0
    %79 = vadd.xlane.f32.xlu0 %v78
    %v80 = vpop.xlane.xlu0 %79
    %v81 = vsel %vm62, %v59, 0.0
    %82 = vadd.xlane.f32.xlu0 %v81
    %v83 = vpop.xlane.xlu0 %82
    %v84 = vsel %vm62, %v60, 0.0
    %85 = vadd.xlane.f32.xlu0 %v84
    %v86 = vpop.xlane.xlu0 %85
    %v95 = vlaneseq
    %v96 = vand.u32 %v95, 127
    %v97 = vperm.slane %v65, %v96
    %v98 = vadd.s32 %v96, 4294967288
    %v99 = vperm.slane %v68, %v98
    %vm100 = vcmask 130112
    %v101 = vsel %vm100, %v99, %v97
    %v102 = vadd.s32 %v96, 4294967280
    %v103 = vperm.slane %v71, %v102
    %vm104 = vcmask 195712
    %v105 = vsel %vm104, %v103, %v101
    %v106 = vadd.s32 %v96, 4294967272
    %v107 = vperm.slane %v74, %v106
    %vm108 = vcmask 261312
    %v109 = vsel %vm108, %v107, %v105
    %v110 = vperm.slane %v77, %v96
    %v111 = vperm.slane %v80, %v98
    %v112 = vsel %vm100, %v111, %v110
    %v113 = vperm.slane %v83, %v102
    %v114 = vsel %vm104, %v113, %v112
    %v115 = vperm.slane %v86, %v106
    %v116 = vsel %vm108, %v115, %v114
    %vm117 = vcmask 1041409
    %v118 = vsel %vm117, %v116, %v109
    %v120 = vadd.f32 %v61, %v118
    %vm121 = vcmask 254976
    %122 = vst.msk [vmem:[#allocation2] sm:$0x3] %vm121, %v120
    // Predicated region
    $region38: #{tpu_custom_call.1} parent=1 // pred_check
      %p123 = pneg %p41
    $region39: #{tpu_custom_call.1} parent=1 // pred_check_branch
      %125 = sbr.rel (%p123) target = $region41
    $region40: #{tpu_custom_call.1} parent=1 // pred_region
      %v126 = vld [vmem:[#allocation2] sm:$0x3]
      %v127 = vld [vmem:[%s1] sm:$0xff]
      %v128 = vld [vmem:[%s1 + $0x8] sm:$0xff]
      %v129 = vld [vmem:[%s1 + $0x10] sm:$0xff]
      %v130 = vld [vmem:[%s1 + $0x18] sm:$0xff]
      %v131 = vld [vmem:[#allocation3] sm:$0x3]
      %vm132 = vcmask 261120
      %v134 = vsel %vm132, %v126, 0
      %136 = vmatpush.msra.mxu0 0.0
      %137 = vmatpush.msra.mxu0 0.0
      %138 = vmatpush.msra.mxu0 0.0
      %139 = vmatpush.msra.mxu0 0.0
      %140 = vmatpush.msra.mxu0 0.0
      %141 = vmatpush.msra.mxu0 0.0
      %142 = vmatpush.msra.mxu0 0.0
      %143 = vmatpush.msra.mxu0 0.0
      %144 = vmatpush.msra.mxu0 0.0
      %145 = vmatpush.msra.mxu0 0.0
      %146 = vmatpush.msra.mxu0 0.0
      %147 = vmatpush.msra.mxu0 0.0
      %148 = vmatpush.msra.mxu0 %v130
      %149 = vmatpush.msra.mxu0 %v129
      %150 = vmatpush.msra.mxu0 %v128
      %151 = vmatpush.msra.mxu0 %v127
      %152 = vmatmul.f32.gmra.mxu0 %v134
      %v153 = vpop.f32.mrf.mxu0
      %v154 = vadd.f32 0.0, %v153
      %155 = vdwg.mxu0
      %v156 = vadd.f32 %v131, %v154
      %vm157 = vcmask 74752
      %158 = vst.msk [vmem:[#allocation3] sm:$0x3] %vm157, %v156
    $region41: #{tpu_custom_call.1} parent=1 // pred_fallthru
      _
    // Predicated region
    $region42: #{tpu_custom_call.1} parent=1 // pred_check
      _
    $region43: #{tpu_custom_call.1} parent=1 // pred_check_branch
      %160 = sbr.rel (%p42) target = $region45
    $region44: #{tpu_custom_call.1} parent=1 // pred_region
      %v161 = vld [vmem:[#allocation3] sm:$0x3]
      %v162 = vmul.f32 %v161, 0.015625
      %v163 = vld [vmem:[%s2] sm:$0x1]
      %v165 = vperm.slane %v163, 0
      %v167 = vadd.f32 %v162, %v165
      %v168 = vld [vmem:[%s3] sm:$0x3]
      %v169 = vld [vmem:[%s4] sm:$0x3]
      %v170 = vld [vmem:[%s5] sm:$0x3]
      %v171 = vmul.f32 %v167, %v167
      %173 = vrot.lane.b32.xlu0 %v171, 127
      %v174 = vpop.permute.xlu0 %173
      %v176 = vadd.f32 %v171, %v174
      %177 = vrot.lane.b32.xlu0 %v171, 126
      %v178 = vpop.permute.xlu0 %177
      %v180 = vadd.f32 %v176, %v178
      %v181 = vmax.f32 %v180, 1e-16
      %v182 = vrsqrt.pop %v181
      %v183 = vmul.f32 %v182, %v181
      %v184 = vmul.f32 %v183, %v182
      %v185 = vmul.f32 0.5, %v184
      %v186 = vsub.f32 1.5, %v185
      %v187 = vmul.f32 %v182, %v186
      %vm188 = vweird.f32 %v181
      %vm189 = vweird.f32 %v182
      %vm190 = vmor %vm188, %vm189
      %v191 = vsel %vm190, %v182, %v187
      %v192 = vmul.f32 %v167, %v191
      %194 = vrot.lane.b32.xlu0 %v191, 1
      %v195 = vpop.permute.xlu0 %194
      %v197 = vmul.f32 %v167, %v195
      %198 = vrot.lane.b32.xlu0 %v191, 2
      %v199 = vpop.permute.xlu0 %198
      %v201 = vmul.f32 %v167, %v199
      %203 = vrot.lane.b32.xlu0 %v167, 124
      %v204 = vpop.permute.xlu0 %203
      %v206 = vmul.f32 %v197, %v204
      %207 = vrot.lane.b32.xlu0 %v167, 126
      %v208 = vpop.permute.xlu0 %207
      %v210 = vmul.f32 %v201, %v208
      %212 = vrot.lane.b32.xlu0 %v210, 127
      %v213 = vpop.permute.xlu0 %212
      %v215 = vsub.f32 %v206, %v213
      %216 = vrot.lane.b32.xlu0 %v167, 127
      %v217 = vpop.permute.xlu0 %216
      %v219 = vmul.f32 %v201, %v217
      %220 = vrot.lane.b32.xlu0 %v167, 123
      %v221 = vpop.permute.xlu0 %220
      %v223 = vmul.f32 %v192, %v221
      %225 = vrot.lane.b32.xlu0 %v223, 2
      %v226 = vpop.permute.xlu0 %225
      %v228 = vsub.f32 %v219, %v226
      %v229 = vmul.f32 %v192, %v204
      %v230 = vmul.f32 %v197, %v208
      %232 = vrot.lane.b32.xlu0 %v230, 127
      %v233 = vpop.permute.xlu0 %232
      %v235 = vsub.f32 %v229, %v233
      %v236 = vmul.f32 %v215, %v215
      %v237 = vmul.f32 %v228, %v228
      %239 = vrot.lane.b32.xlu0 %v237, 127
      %v240 = vpop.permute.xlu0 %239
      %v242 = vadd.f32 %v236, %v240
      %v243 = vmul.f32 %v235, %v235
      %245 = vrot.lane.b32.xlu0 %v243, 1
      %v246 = vpop.permute.xlu0 %245
      %v248 = vadd.f32 %v242, %v246
      %v249 = vmax.f32 %v248, 1e-16
      %v250 = vrsqrt.pop %v249
      %v251 = vmul.f32 %v250, %v249
      %v252 = vmul.f32 %v251, %v250
      %v253 = vmul.f32 0.5, %v252
      %v254 = vsub.f32 1.5, %v253
      %v255 = vmul.f32 %v250, %v254
      %vm256 = vweird.f32 %v249
      %vm257 = vweird.f32 %v250
      %vm258 = vmor %vm256, %vm257
      %v259 = vsel %vm258, %v250, %v255
      %v260 = vmul.f32 %v215, %v259
      %262 = vrot.lane.b32.xlu0 %v259, 1
      %v263 = vpop.permute.xlu0 %262
      %v265 = vmul.f32 %v228, %v263
      %266 = vrot.lane.b32.xlu0 %v259, 127
      %v267 = vpop.permute.xlu0 %266
      %v269 = vmul.f32 %v235, %v267
      %v270 = vmul.f32 %v265, %v201
      %272 = vrot.lane.b32.xlu0 %v197, 127
      %v273 = vpop.permute.xlu0 %272
      %v275 = vmul.f32 %v269, %v273
      %277 = vrot.lane.b32.xlu0 %v275, 2
      %v278 = vpop.permute.xlu0 %277
      %v280 = vsub.f32 %v270, %v278
      %v281 = vmul.f32 %v269, %v192
      %283 = vrot.lane.b32.xlu0 %v201, 127
      %v284 = vpop.permute.xlu0 %283
      %v286 = vmul.f32 %v260, %v284
      %288 = vrot.lane.b32.xlu0 %v286, 127
      %v289 = vpop.permute.xlu0 %288
      %v291 = vsub.f32 %v281, %v289
      %v292 = vmul.f32 %v260, %v197
      %294 = vrot.lane.b32.xlu0 %v192, 2
      %v295 = vpop.permute.xlu0 %294
      %v297 = vmul.f32 %v265, %v295
      %299 = vrot.lane.b32.xlu0 %v297, 127
      %v300 = vpop.permute.xlu0 %299
      %v302 = vsub.f32 %v292, %v300
      %303 = vset.pattern.permute.xlu0 0
      %304 = vperm.xlu0 %303, %v192
      %v305 = vpop.permute.xlu0 %304
      %v307 = vmul.f32 %v305, %v168
      %309 = vset.pattern.permute.xlu0 2
      %310 = vperm.xlu0 %309, %v280
      %v311 = vpop.permute.xlu0 %310
      %v313 = vmul.f32 %v311, %v168
      %315 = vrot.lane.b32.xlu0 %v313, 124
      %v316 = vpop.permute.xlu0 %315
      %v318 = vadd.f32 %v307, %v316
      %320 = vset.pattern.permute.xlu0 1
      %321 = vperm.xlu0 %320, %v260
      %v322 = vpop.permute.xlu0 %321
      %v324 = vmul.f32 %v322, %v168
      %326 = vrot.lane.b32.xlu0 %v324, 120
      %v327 = vpop.permute.xlu0 %326
      %v329 = vadd.f32 %v318, %v327
      %330 = vset.pattern.permute.xlu0 1
      %331 = vperm.xlu0 %330, %v197
      %v332 = vpop.permute.xlu0 %331
      %v334 = vmul.f32 %v332, %v168
      %336 = vset.pattern.permute.xlu0 0
      %337 = vperm.xlu0 %336, %v291
      %v338 = vpop.permute.xlu0 %337
      %v340 = vmul.f32 %v338, %v168
      %342 = vrot.lane.b32.xlu0 %v340, 124
      %v343 = vpop.permute.xlu0 %342
      %v345 = vadd.f32 %v334, %v343
      %347 = vset.pattern.permute.xlu0 2
      %348 = vperm.xlu0 %347, %v265
      %v349 = vpop.permute.xlu0 %348
      %v351 = vmul.f32 %v349, %v168
      %353 = vrot.lane.b32.xlu0 %v351, 120
      %v354 = vpop.permute.xlu0 %353
      %v356 = vadd.f32 %v345, %v354
      %357 = vset.pattern.permute.xlu0 2
      %358 = vperm.xlu0 %357, %v201
      %v359 = vpop.permute.xlu0 %358
      %v361 = vmul.f32 %v359, %v168
      %363 = vset.pattern.permute.xlu0 1
      %364 = vperm.xlu0 %363, %v302
      %v365 = vpop.permute.xlu0 %364
      %v367 = vmul.f32 %v365, %v168
      %369 = vrot.lane.b32.xlu0 %v367, 124
      %v370 = vpop.permute.xlu0 %369
      %v372 = vadd.f32 %v361, %v370
      %374 = vset.pattern.permute.xlu0 0
      %375 = vperm.xlu0 %374, %v269
      %v376 = vpop.permute.xlu0 %375
      %v378 = vmul.f32 %v376, %v168
      %380 = vrot.lane.b32.xlu0 %v378, 120
      %v381 = vpop.permute.xlu0 %380
      %v383 = vadd.f32 %v372, %v381
      %385 = vrot.lane.b32.xlu0 %v168, 125
      %v386 = vpop.permute.xlu0 %385
      %v388 = vmul.f32 %v167, %v386
      %v389 = vrcp.pop %v168
      %v390 = vmul.f32 %v168, %v389
      %v391 = vsub.f32 1.0, %v390
      %v392 = vmul.f32 %v389, %v391
      %v393 = vadd.f32 %v389, %v392
      %vm394 = vweird.f32 %v168
      %vm395 = vweird.f32 %v389
      %vm396 = vmor %vm394, %vm395
      %v397 = vsel %vm396, %v389, %v393
      %v398 = vand.u32 2147483647, %v168
      %vm399 = vcmp.eq.f32.partialorder %v398, 8.507059e+37
      %v400 = vand.u32 %v168, 2147483648
      %v401 = vor.u32 1.1754944e-38, %v400
      %v402 = vsel %vm399, %v401, %v397
      %v403 = vrcp.pop %v169
      %v404 = vmul.f32 %v169, %v403
      %v405 = vsub.f32 1.0, %v404
      %v406 = vmul.f32 %v403, %v405
      %v407 = vadd.f32 %v403, %v406
      %vm408 = vweird.f32 %v169
      %vm409 = vweird.f32 %v403
      %vm410 = vmor %vm408, %vm409
      %v411 = vsel %vm410, %v403, %v407
      %v412 = vand.u32 2147483647, %v169
      %vm413 = vcmp.eq.f32.partialorder %v412, 8.507059e+37
      %v414 = vand.u32 %v169, 2147483648
      %v415 = vor.u32 1.1754944e-38, %v414
      %v416 = vsel %vm413, %v415, %v411
      %418 = vrot.lane.b32.xlu0 %v416, 6
      %v419 = vpop.permute.xlu0 %418
      %v421 = vmul.f32 %v167, %v419
      %423 = vrot.lane.b32.xlu0 %v402, 120
      %v424 = vpop.permute.xlu0 %423
      %v426 = vmul.f32 %v168, %v424
      %428 = vrot.lane.b32.xlu0 %v426, 3
      %v429 = vpop.permute.xlu0 %428
      %v431 = vadd.f32 %v421, %v429
      %433 = vrot.lane.b32.xlu0 %v388, 126
      %v434 = vpop.permute.xlu0 %433
      %v436 = vmul.f32 %v431, %v434
      %437 = vrot.lane.b32.xlu0 %v416, 3
      %v438 = vpop.permute.xlu0 %437
      %v440 = vmul.f32 %v167, %v438
      %441 = vrot.lane.b32.xlu0 %v402, 124
      %v442 = vpop.permute.xlu0 %441
      %v444 = vmul.f32 %v168, %v442
      %v445 = vadd.f32 %v440, %v444
      %446 = vrot.lane.b32.xlu0 %v388, 127
      %v447 = vpop.permute.xlu0 %446
      %v449 = vmul.f32 %v445, %v447
      %v450 = vmul.f32 %v167, 1.442695
      %v451 = vpow.pop %v450
      %453 = vrot.lane.b32.xlu0 %v170, 9
      %v454 = vpop.permute.xlu0 %453
      %v456 = vmul.f32 %v451, %v454
      %457 = vrot.lane.b32.xlu0 %v170, 5
      %v458 = vpop.permute.xlu0 %457
      %v460 = vmul.f32 %v451, %v458
      %462 = vrot.lane.b32.xlu0 %v329, 10
      %v463 = vpop.permute.xlu0 %462
      %466 = vrot.lane.b32.xlu0 %v436, 7
      %v467 = vpop.permute.xlu0 %466
      %470 = vrot.lane.b32.xlu0 %v356, 14
      %v471 = vpop.permute.xlu0 %470
      %474 = vrot.lane.b32.xlu0 %v449, 10
      %v475 = vpop.permute.xlu0 %474
      %478 = vrot.lane.b32.xlu0 %v383, 18
      %v479 = vpop.permute.xlu0 %478
      %481 = vrot.lane.b32.xlu0 %v388, 13
      %v482 = vpop.permute.xlu0 %481
      %484 = vrot.lane.b32.xlu0 %v168, 10
      %v485 = vpop.permute.xlu0 %484
      %488 = vrot.lane.b32.xlu0 %v456, 17
      %v489 = vpop.permute.xlu0 %488
      %491 = vrot.lane.b32.xlu0 %v170, 26
      %v492 = vpop.permute.xlu0 %491
      %495 = vrot.lane.b32.xlu0 %v460, 21
      %v496 = vpop.permute.xlu0 %495
      %vm498 = vcmask 80896
      %v499 = vsel %vm498, %v167, %v463
      %vm500 = vcmask 105472
      %v501 = vsel %vm500, %v499, %v467
      %vm502 = vcmask 113664
      %v503 = vsel %vm502, %v501, %v471
      %vm504 = vcmask 138240
      %v505 = vsel %vm504, %v503, %v475
      %vm506 = vcmask 146432
      %v507 = vsel %vm506, %v505, %v479
      %vm508 = vcmask 171008
      %v509 = vsel %vm508, %v507, %v482
      %vm510 = vcmask 179200
      %v511 = vsel %vm510, %v509, %v485
      %vm512 = vcmask 211968
      %v513 = vsel %vm512, %v511, %v489
      %vm514 = vcmask 220160
      %v515 = vsel %vm514, %v513, %v492
      %vm516 = vcmask 244736
      %v517 = vsel %vm516, %v515, %v496
      %vm518 = vcmask 252928
      %v519 = vsel %vm518, %v517, %v492
      %vm520 = vcmask 285696
      %v521 = vsel %vm520, %v519, 0.0
      %522 = vst [vmem:[#allocation7] sm:$0x3] %v521
    $region45: #{tpu_custom_call.1} parent=1 // pred_fallthru
      _
    // Predicated region
    $region46: #{tpu_custom_call.1} parent=1 // pred_check
      _
    $region47: #{tpu_custom_call.1} parent=1 // pred_check_branch
      %524 = sbr.rel (0) target = $region49
    $region48: #{tpu_custom_call.1} parent=1 // pred_region
      %526 = vsyncadd [#allocation6], 0
      %s528 = sshll.u32 [#allocation7], 4
      %s529 = int_to_ptr.vmem [resolvable:$true] %s528
      %s530 = sshll.u32 %s6, 4
      %s531 = int_to_ptr.hbm [resolvable:$true] %s530
      %533 = dma.vmem_to_hbm [thread:$0]  %s529, 32, %s531, [#allocation6]
    $region49: #{tpu_custom_call.1} parent=1 // pred_fallthru
      _
    // Predicated region
    $region50: #{tpu_custom_call.1} parent=1 // pred_check
      _
    $region51: #{tpu_custom_call.1} parent=1 // pred_check_branch
      %535 = sbr.rel (0) target = $region53
    $region52: #{tpu_custom_call.1} parent=1 // pred_region
      %537 = dma.done [#allocation6], 32
    $region53: #{tpu_custom_call.1} parent=1 // pred_fallthru
      _
    %538 = vsyncpa [#allocation5], 1
    %539 = vsyncpa [#allocation6], 1

</llo_original>
